<compile_context>
chip_gen: v7x
topology: tpu7x:2x2x1
jax: 0.10.0
libtpu: 0.0.40
codegen_flags: <defaults>
</compile_context>

<pallas_src>
import jax
import jax.numpy as jnp
import numpy as np
from jax.experimental import pallas as pl
from jax.experimental.pallas import tpu as pltpu

# ---------------- problem sizes (small, consistent with the module) ----------------
B = 8     # batch = number of query frames
F = 32    # input feature dim of the wrapped model
D = 128   # embedding dim (lane friendly)
C = 4     # coordinate sets per frame (the dim cdist is .mean(dim=0)'d over)
N = 16    # database frames per sequence
P = 3     # xyz
S = 1     # sequences in the dataset / memory bank

POSE_DIST_THRESHOLD = 10.0   # dataset_cfgs.pose_dist_threshold
POS_OVERLAP_THRESHOLD = 0.5  # dataset_cfgs.pos_overlap_threshold
NEG_OVERLAP_THRESHOLD = 0.1  # dataset_cfgs.neg_overlap_threshold
TEMPERATURE = 0.1            # synthetic loss temperature


# ---------------------------------------------------------------------------
# Fused kernel: model head + mask gather + loss + memory-bank scatter
# ---------------------------------------------------------------------------
def _fused_kernel(seq_ref,        # SMEM (1,) int32 scalar-prefetch: curr_seq_ID (used by index_maps)
                  x_ref,          # VMEM [B, F]     : model input
                  w_ref,          # VMEM [F, 2D]    : merged [w1 | w2] projection
                  frames_ref,     # VMEM [B, 1] i32 : frame IDs of the batch
                  ov_ref,         # VMEM [N, N]     : precomputed overlap_ratio for curr sequence
                  mb_ref,         # VMEM [2N, D]    : memory-bank block (emb1 rows, then emb2 rows)
                  loss_ref,       # VMEM [1, 1]     : scalar loss out
                  mb_out_ref):    # VMEM [2N, D]    : updated bank block (aliased with mb_ref)
    del seq_ref  # only consumed by the BlockSpec index_maps (selects the bank block)

    # ---- model head: ONE MXU push for both embedding streams, per-stream L2 normalize ----
    e = jnp.dot(x_ref[...], w_ref[...], preferred_element_type=jnp.float32)   # [B, 2D]
    e1 = e[:, :D]                                  # lane-tile aligned slices (128 boundary)
    e2 = e[:, D:]
    e1 = e1 * jax.lax.rsqrt(jnp.sum(e1 * e1, axis=-1, keepdims=True) + 1e-12)
    e2 = e2 * jax.lax.rsqrt(jnp.sum(e2 * e2, axis=-1, keepdims=True) + 1e-12)

    # ---- one-hot over database frames (shared by the overlap gather and the bank scatter) ----
    frames = frames_ref[...]                                            # [B, 1] int32
    frame_iota = jax.lax.broadcasted_iota(jnp.int32, (B, N), 1)         # frame id per lane
    onehot = (frames == frame_iota).astype(jnp.float32)                 # [B, N]

    # ---- gather query rows of the precomputed overlap matrix: ov = onehot @ overlap ----
    ov = jnp.dot(onehot, ov_ref[...], preferred_element_type=jnp.float32)   # [B, N]

    # ---- loss_fn: masked InfoNCE; both streams stacked on sublanes -> ONE LSE chain ----
    db = mb_ref[...]                                                    # [2N, D] (old bank)
    cdim = (((1,), (1,)), ((), ()))                                     # contract feature dims
    sim1 = jax.lax.dot_general(e1, db[:N], cdim, preferred_element_type=jnp.float32)   # [B, N]
    sim2 = jax.lax.dot_general(e2, db[N:], cdim, preferred_element_type=jnp.float32)   # [B, N]
    sim = jnp.concatenate([sim1, sim2], axis=0) * (1.0 / TEMPERATURE)   # [2B, N]

    ov2 = jnp.concatenate([ov, ov], axis=0)                             # [2B, N]
    pos = (ov2 > POS_OVERLAP_THRESHOLD).astype(jnp.float32)             # torch.gt -> positives_mask
    neg = (ov2 <= NEG_OVERLAP_THRESHOLD).astype(jnp.float32)            # torch.le -> negatives_mask
    valid = jnp.maximum(pos, neg)                                       # ambiguous pairs excluded
    has_pos = jnp.sum(pos, axis=-1, keepdims=True) > 0.0                # [2B, 1] guard

    neg_inf = jnp.float32(-1e30)
    logits_all = jnp.where(valid > 0.0, sim, neg_inf)
    logits_pos = jnp.where(pos > 0.0, sim, neg_inf)                     # pos ⊆ valid -> max-safe
    m = jnp.max(logits_all, axis=-1, keepdims=True)
    lse_all = jnp.log(jnp.sum(jnp.exp(logits_all - m), axis=-1, keepdims=True)) + m
    lse_pos = jnp.log(jnp.sum(jnp.exp(logits_pos - m), axis=-1, keepdims=True)) + m
    per_row = jnp.where(has_pos, lse_all - lse_pos, 0.0)                # rows w/o positives -> 0

    hp = has_pos.astype(jnp.float32)
    n_rows = jnp.maximum(jnp.sum(hp, axis=0, keepdims=True), 1.0)       # [1, 1]
    inv_rows = pl.reciprocal(n_rows, approx=True)                       # EUP slot (otherwise idle)
    loss_ref[...] = jnp.sum(per_row, axis=0, keepdims=True) * inv_rows  # == 0.5*(sum1+sum2)/n_rows_B

    # ---- memory-bank writeback: one-hot matmul scatter, last-write-wins on duplicate labels ----
    row_idx = jax.lax.broadcasted_iota(jnp.int32, (B, N), 0).astype(jnp.float32)
    writer = jnp.where(onehot > 0.0, row_idx, -1.0)
    last_writer = jnp.max(writer, axis=0, keepdims=True)                # [1, N] last batch row per frame
    winner = jnp.where((onehot > 0.0) & (row_idx == last_writer), 1.0, 0.0)   # [B, N], <=1 one per column

    scat = (((0,), (0,)), ((), ()))                                     # contract batch dim
    upd1 = jax.lax.dot_general(winner, e1, scat, preferred_element_type=jnp.float32)   # [N, D]
    upd2 = jax.lax.dot_general(winner, e2, scat, preferred_element_type=jnp.float32)   # [N, D]
    cnt = jax.lax.dot_general(winner, jnp.ones((B, 1), jnp.float32), scat,
                              preferred_element_type=jnp.float32)       # [N, 1]
    written = cnt > 0.5                                                 # which frames were updated

    mb_out_ref[:N, :] = jnp.where(written, upd1, db[:N, :])             # two full-width lane-dense
    mb_out_ref[N:, :] = jnp.where(written, upd2, db[N:, :])             # stores (no row loop)


# ---------------------------------------------------------------------------
# ModelWithLoss.forward
# ---------------------------------------------------------------------------
def _forward_impl(data_input, params, utm_coord_tensor, memory_bank):
    # labels are (seq_ID, frame_ID) pairs, exactly as in the PyTorch module
    labels = data_input["labels"].astype(jnp.int32)            # [B, 2]
    seq_id = labels[0:1, 0]                                    # curr_seq_ID, shape (1,)
    frames = labels[:, 1:2]                                    # frame IDs,   shape (B, 1)

    # ---- 'all_coords_L2_mean' branch: torch.cdist(db, db, p=2).mean(dim=0) -> overlap_ratio.
    # Depends only on the static per-sequence UTM coords, so it is hoisted out of the kernel
    # (could be cached once per sequence); the kernel gathers its query rows by label. ----
    utm = jax.lax.dynamic_index_in_dim(utm_coord_tensor, seq_id[0], axis=0, keepdims=False)  # [C,N,P]
    diff = utm[:, :, None, :] - utm[:, None, :, :]                                   # [C, N, N, P]
    mean_dist = jnp.mean(jnp.sqrt(jnp.sum(diff * diff, axis=-1)), axis=0)            # [N, N]
    overlap = jnp.where(mean_dist >= POSE_DIST_THRESHOLD, 0.0,
                        (POSE_DIST_THRESHOLD - mean_dist) / POSE_DIST_THRESHOLD)     # overlap[zero]=0

    n_seq = memory_bank.shape[0]
    mb_flat = memory_bank.reshape(n_seq, 2 * N, D)             # emb1 rows then emb2 rows per seq

    grid_spec = pltpu.PrefetchScalarGridSpec(
        num_scalar_prefetch=1,                                 # seq_id -> SMEM, feeds the index_maps
        grid=(1,),
        # TODO(synk): if several sequences / batch chunks are processed per step, make this a
        # leading "parallel" grid axis to use both v7x TensorCores.
        in_specs=[
            pl.BlockSpec((B, F), lambda i, seq: (0, 0)),
            pl.BlockSpec((F, 2 * D), lambda i, seq: (0, 0)),
            pl.BlockSpec((B, 1), lambda i, seq: (0, 0)),
            pl.BlockSpec((N, N), lambda i, seq: (0, 0)),
            pl.BlockSpec((None, 2 * N, D), lambda i, seq: (seq[0], 0, 0)),   # bank block of curr seq
        ],
        out_specs=(
            pl.BlockSpec((1, 1), lambda i, seq: (0, 0)),
            pl.BlockSpec((None, 2 * N, D), lambda i, seq: (seq[0], 0, 0)),
        ),
    )

    loss, mb_new = pl.pallas_call(
        _fused_kernel,
        out_shape=(jax.ShapeDtypeStruct((1, 1), jnp.float32),
                   jax.ShapeDtypeStruct((n_seq, 2 * N, D), jnp.float32)),
        grid_spec=grid_spec,
        # input indices count the scalar-prefetch operand:
        #   0=seq_id, 1=x, 2=w, 3=frames, 4=overlap, 5=memory bank  -> bank aliased to output 1
        input_output_aliases={5: 1},
        compiler_params=pltpu.CompilerParams(dimension_semantics=("arbitrary",)),
    )(seq_id, data_input["x"], params["w"], frames, overlap, mb_flat)

    return loss[0, 0], mb_new.reshape(memory_bank.shape)


# memory_bank (arg 3) is donated so the in-kernel aliasing is in-place end-to-end;
# callers must thread the returned bank into the next step (as the PyTorch module mutates it).
_forward_jit = jax.jit(_forward_impl, donate_argnums=(3,))


def model_with_loss_forward(data_input, params, dataset):
    # world_size == 1: the all_gather over key_embeddings1/2 is an exact identity (torch.cat of a
    # single tensor), so the embeddings never need to leave the fused kernel.
    # TODO(synk): multi-host torch.distributed.all_gather / block_diag has no single-device Pallas
    # equivalent and is not modeled here.
    return _forward_jit(data_input, params, dataset["UTM_coord_tensor"], dataset["memory_bank"])


if __name__ == "__main__":
    key = jax.random.PRNGKey(0)
    k1, k2, k3, k4, k5 = jax.random.split(key, 5)

    x = jax.random.normal(k1, (B, F), jnp.float32)
    w = 0.1 * jax.random.normal(k2, (F, 2 * D), jnp.float32)          # merged [w1 | w2] head
    utm = jax.random.uniform(k3, (S, C, N, P), jnp.float32, minval=0.0, maxval=30.0)
    mb = 0.5 * jax.random.normal(k4, (S, 2, N, D), jnp.float32)       # memory bank (not normalized)
    frame_ids = jax.random.randint(k5, (B,), 0, N, jnp.int32)         # may contain duplicates
    labels = jnp.stack([jnp.zeros((B,), jnp.int32), frame_ids], axis=1)   # (seq_ID, frame_ID) pairs

    data_input = {"x": x, "labels": labels}
    params = {"w": w}
    dataset = {"UTM_coord_tensor": utm, "memory_bank": mb}

    # host snapshots (memory_bank is donated to the jitted call)
    x_np, w_np = np.asarray(x), np.asarray(w)
    utm_np, mb_np = np.asarray(utm), np.asarray(mb)
    frames_np = np.asarray(frame_ids)

    loss, new_mb = model_with_loss_forward(data_input, params, dataset)
    loss, new_mb = jax.block_until_ready((loss, new_mb))

    # ---------------- pure-numpy reference (same math) ----------------
    e = x_np @ w_np
    e1, e2 = e[:, :D], e[:, D:]
    e1 = e1 / np.sqrt((e1 * e1).sum(-1, keepdims=True) + 1e-12)
    e2 = e2 / np.sqrt((e2 * e2).sum(-1, keepdims=True) + 1e-12)

    dif = utm_np[0][:, :, None, :] - utm_np[0][:, None, :, :]
    mdist = np.sqrt((dif * dif).sum(-1)).mean(0)
    ovl = np.where(mdist >= POSE_DIST_THRESHOLD, 0.0,
                   (POSE_DIST_THRESHOLD - mdist) / POSE_DIST_THRESHOLD)
    ovq = ovl[frames_np]                                              # [B, N]
    pos_m = ovq > POS_OVERLAP_THRESHOLD
    neg_m = ovq <= NEG_OVERLAP_THRESHOLD
    valid_m = pos_m | neg_m
    hasp = pos_m.any(-1)

    def _stream_loss(q, dbv):
        s = (q @ dbv.T) / TEMPERATURE
        la = np.where(valid_m, s, -1e30)
        lp = np.where(pos_m, s, -1e30)
        mm = la.max(-1, keepdims=True)
        lse_a = np.log(np.exp(la - mm).sum(-1)) + mm[:, 0]
        lse_p = np.log(np.exp(lp - mm).sum(-1)) + mm[:, 0]
        return np.where(hasp, lse_a - lse_p, 0.0).sum()

    n_rows_ref = max(int(hasp.sum()), 1)
    loss_ref = 0.5 * (_stream_loss(e1, mb_np[0, 0]) + _stream_loss(e2, mb_np[0, 1])) / n_rows_ref

    bank_ref = mb_np.copy()
    for b in range(B):                                                # last write wins (torch semantics)
        bank_ref[0, 0, frames_np[b]] = e1[b]
        bank_ref[0, 1, frames_np[b]] = e2[b]

    new_mb_np = np.asarray(new_mb)
    assert new_mb_np.shape == mb_np.shape
    assert np.isfinite(float(loss))
    np.testing.assert_allclose(new_mb_np, bank_ref, atol=1e-2)
    assert abs(float(loss) - float(loss_ref)) < 0.5, (float(loss), float(loss_ref))
    print("KERNEL_OK")
</pallas_src>

<mosaic_0001>
module attributes {stable_mosaic.version = 11 : i64} {
  func.func @_fused_kernel(%arg0: i32, %arg1: memref<1xi32, #tpu.memory_space<smem>>, %arg2: memref<8x32xf32, #tpu.memory_space<vmem>>, %arg3: memref<32x256xf32, #tpu.memory_space<vmem>>, %arg4: memref<8x1xi32, #tpu.memory_space<vmem>>, %arg5: memref<16x16xf32, #tpu.memory_space<vmem>>, %arg6: memref<1x32x128xf32, #tpu.memory_space<vmem>>, %arg7: memref<1x1xf32, #tpu.memory_space<vmem>>, %arg8: memref<1x32x128xf32, #tpu.memory_space<vmem>>) attributes {dimension_semantics = [#tpu.dimension_semantics<arbitrary>], iteration_bounds = array<i64: 1>, scalar_prefetch = 1 : i64, scratch_operands = 0 : i64, tpu.core_type = #tpu.core_type<tc>, window_params = [{pipeline_mode = #tpu.pipeline_mode<synchronous>, transform_indices = @transform_0, window_bounds = array<i64: 8, 32>}, {pipeline_mode = #tpu.pipeline_mode<synchronous>, transform_indices = @transform_1, window_bounds = array<i64: 32, 256>}, {pipeline_mode = #tpu.pipeline_mode<synchronous>, transform_indices = @transform_2, window_bounds = array<i64: 8, 1>}, {pipeline_mode = #tpu.pipeline_mode<synchronous>, transform_indices = @transform_3, window_bounds = array<i64: 16, 16>}, {transform_indices = @transform_4, window_bounds = array<i64: 1, 32, 128>}, {pipeline_mode = #tpu.pipeline_mode<synchronous>, transform_indices = @transform_5, window_bounds = array<i64: 1, 1>}, {transform_indices = @transform_6, window_bounds = array<i64: 1, 32, 128>}]} {
    %c0 = arith.constant 0 : index
    %c0_0 = arith.constant 0 : index
    %0 = vector.load %arg2[%c0, %c0_0] : memref<8x32xf32, #tpu.memory_space<vmem>>, vector<8x32xf32>
    %c0_1 = arith.constant 0 : index
    %c0_2 = arith.constant 0 : index
    %1 = vector.load %arg3[%c0_1, %c0_2] : memref<32x256xf32, #tpu.memory_space<vmem>>, vector<32x256xf32>
    %cst = arith.constant dense<0.000000e+00> : vector<8x256xf32>
    %2 = tpu.matmul %0, %1, %cst {dimension_numbers = #tpu.dot_dimension_numbers<[1], [0], [0], [1], [0, 0, 1, 1], [], []>} : vector<8x32xf32>, vector<32x256xf32>, vector<8x256xf32> -> vector<8x256xf32>
    %3 = vector.extract_strided_slice %2 {offsets = [0, 0], sizes = [8, 128], strides = [1, 1]} : vector<8x256xf32> to vector<8x128xf32>
    %4 = vector.extract_strided_slice %2 {offsets = [0, 128], sizes = [8, 128], strides = [1, 1]} : vector<8x256xf32> to vector<8x128xf32>
    %5 = arith.mulf %3, %3 : vector<8x128xf32>
    %cst_3 = arith.constant dense<0.000000e+00> : vector<8xf32>
    %6 = vector.multi_reduction <add>, %5, %cst_3 [1] : vector<8x128xf32> to vector<8xf32>
    %7 = vector.shape_cast %6 : vector<8xf32> to vector<8x1xf32>
    %cst_4 = arith.constant 9.99999996E-13 : f32
    %8 = vector.broadcast %cst_4 : f32 to vector<8x1xf32>
    %9 = arith.addf %7, %8 : vector<8x1xf32>
    %10 = math.rsqrt %9 : vector<8x1xf32>
    %11 = vector.broadcast %10 : vector<8x1xf32> to vector<8x128xf32>
    %12 = arith.mulf %3, %11 : vector<8x128xf32>
    %13 = arith.mulf %4, %4 : vector<8x128xf32>
    %cst_5 = arith.constant dense<0.000000e+00> : vector<8xf32>
    %14 = vector.multi_reduction <add>, %13, %cst_5 [1] : vector<8x128xf32> to vector<8xf32>
    %15 = vector.shape_cast %14 : vector<8xf32> to vector<8x1xf32>
    %cst_6 = arith.constant 9.99999996E-13 : f32
    %16 = vector.broadcast %cst_6 : f32 to vector<8x1xf32>
    %17 = arith.addf %15, %16 : vector<8x1xf32>
    %18 = math.rsqrt %17 : vector<8x1xf32>
    %19 = vector.broadcast %18 : vector<8x1xf32> to vector<8x128xf32>
    %20 = arith.mulf %4, %19 : vector<8x128xf32>
    %c0_7 = arith.constant 0 : index
    %c0_8 = arith.constant 0 : index
    %21 = vector.load %arg4[%c0_7, %c0_8] : memref<8x1xi32, #tpu.memory_space<vmem>>, vector<8x1xi32>
    %22 = tpu.iota {dimensions = array<i32: 1>} : vector<8x16xi32>
    %23 = vector.broadcast %21 : vector<8x1xi32> to vector<8x16xi32>
    %24 = arith.cmpi eq, %23, %22 : vector<8x16xi32>
    %25 = arith.extui %24 : vector<8x16xi1> to vector<8x16xi32>
    %26 = arith.sitofp %25 : vector<8x16xi32> to vector<8x16xf32>
    %c0_9 = arith.constant 0 : index
    %c0_10 = arith.constant 0 : index
    %27 = vector.load %arg5[%c0_9, %c0_10] : memref<16x16xf32, #tpu.memory_space<vmem>>, vector<16x16xf32>
    %cst_11 = arith.constant dense<0.000000e+00> : vector<8x16xf32>
    %28 = tpu.matmul %26, %27, %cst_11 {dimension_numbers = #tpu.dot_dimension_numbers<[1], [0], [0], [1], [0, 0, 1, 1], [], []>} : vector<8x16xf32>, vector<16x16xf32>, vector<8x16xf32> -> vector<8x16xf32>
    %c0_12 = arith.constant 0 : index
    %c0_13 = arith.constant 0 : index
    %c0_14 = arith.constant 0 : index
    %29 = vector.load %arg6[%c0_12, %c0_13, %c0_14] : memref<1x32x128xf32, #tpu.memory_space<vmem>>, vector<1x32x128xf32>
    %30 = vector.shape_cast %29 : vector<1x32x128xf32> to vector<32x128xf32>
    %31 = vector.extract_strided_slice %30 {offsets = [0, 0], sizes = [16, 128], strides = [1, 1]} : vector<32x128xf32> to vector<16x128xf32>
    %cst_15 = arith.constant dense<0.000000e+00> : vector<8x16xf32>
    %32 = tpu.matmul %12, %31, %cst_15 {dimension_numbers = #tpu.dot_dimension_numbers<[1], [1], [0], [0], [0, 0, 1, 0], [], []>} : vector<8x128xf32>, vector<16x128xf32>, vector<8x16xf32> -> vector<8x16xf32>
    %33 = vector.extract_strided_slice %30 {offsets = [16, 0], sizes = [16, 128], strides = [1, 1]} : vector<32x128xf32> to vector<16x128xf32>
    %cst_16 = arith.constant dense<0.000000e+00> : vector<8x16xf32>
    %34 = tpu.matmul %20, %33, %cst_16 {dimension_numbers = #tpu.dot_dimension_numbers<[1], [1], [0], [0], [0, 0, 1, 0], [], []>} : vector<8x128xf32>, vector<16x128xf32>, vector<8x16xf32> -> vector<8x16xf32>
    %35 = tpu.concatenate %32, %34 in 0 : vector<8x16xf32>, vector<8x16xf32> -> vector<16x16xf32>
    %cst_17 = arith.constant 1.000000e+01 : f32
    %36 = vector.broadcast %cst_17 : f32 to vector<16x16xf32>
    %37 = arith.mulf %35, %36 : vector<16x16xf32>
    %38 = tpu.concatenate %28, %28 in 0 : vector<8x16xf32>, vector<8x16xf32> -> vector<16x16xf32>
    %cst_18 = arith.constant 5.000000e-01 : f32
    %39 = vector.broadcast %cst_18 : f32 to vector<16x16xf32>
    %40 = arith.cmpf ogt, %38, %39 : vector<16x16xf32>
    %41 = arith.extui %40 : vector<16x16xi1> to vector<16x16xi32>
    %42 = arith.sitofp %41 : vector<16x16xi32> to vector<16x16xf32>
    %cst_19 = arith.constant 1.000000e-01 : f32
    %43 = vector.broadcast %cst_19 : f32 to vector<16x16xf32>
    %44 = arith.cmpf ole, %38, %43 : vector<16x16xf32>
    %45 = arith.extui %44 : vector<16x16xi1> to vector<16x16xi32>
    %46 = arith.sitofp %45 : vector<16x16xi32> to vector<16x16xf32>
    %47 = arith.maximumf %42, %46 : vector<16x16xf32>
    %cst_20 = arith.constant dense<0.000000e+00> : vector<16xf32>
    %48 = vector.multi_reduction <add>, %42, %cst_20 [1] : vector<16x16xf32> to vector<16xf32>
    %49 = vector.shape_cast %48 : vector<16xf32> to vector<16x1xf32>
    %cst_21 = arith.constant 0.000000e+00 : f32
    %50 = vector.broadcast %cst_21 : f32 to vector<16x1xf32>
    %51 = arith.cmpf ogt, %49, %50 : vector<16x1xf32>
    %cst_22 = arith.constant 0.000000e+00 : f32
    %52 = vector.broadcast %cst_22 : f32 to vector<16x16xf32>
    %53 = arith.cmpf ogt, %47, %52 : vector<16x16xf32>
    %cst_23 = arith.constant -1.000000e+30 : f32
    %54 = vector.broadcast %cst_23 : f32 to vector<16x16xf32>
    %55 = arith.select %53, %37, %54 : vector<16x16xi1>, vector<16x16xf32>
    %cst_24 = arith.constant 0.000000e+00 : f32
    %56 = vector.broadcast %cst_24 : f32 to vector<16x16xf32>
    %57 = arith.cmpf ogt, %42, %56 : vector<16x16xf32>
    %cst_25 = arith.constant -1.000000e+30 : f32
    %58 = vector.broadcast %cst_25 : f32 to vector<16x16xf32>
    %59 = arith.select %57, %37, %58 : vector<16x16xi1>, vector<16x16xf32>
    %cst_26 = arith.constant dense<0xFF800000> : vector<16xf32>
    %60 = vector.multi_reduction <maximumf>, %55, %cst_26 [1] : vector<16x16xf32> to vector<16xf32>
    %61 = vector.shape_cast %60 : vector<16xf32> to vector<16x1xf32>
    %62 = vector.broadcast %61 : vector<16x1xf32> to vector<16x16xf32>
    %63 = arith.subf %55, %62 : vector<16x16xf32>
    %64 = math.exp %63 : vector<16x16xf32>
    %cst_27 = arith.constant dense<0.000000e+00> : vector<16xf32>
    %65 = vector.multi_reduction <add>, %64, %cst_27 [1] : vector<16x16xf32> to vector<16xf32>
    %66 = vector.shape_cast %65 : vector<16xf32> to vector<16x1xf32>
    %67 = math.log %66 : vector<16x1xf32>
    %68 = arith.addf %67, %61 : vector<16x1xf32>
    %69 = vector.broadcast %61 : vector<16x1xf32> to vector<16x16xf32>
    %70 = arith.subf %59, %69 : vector<16x16xf32>
    %71 = math.exp %70 : vector<16x16xf32>
    %cst_28 = arith.constant dense<0.000000e+00> : vector<16xf32>
    %72 = vector.multi_reduction <add>, %71, %cst_28 [1] : vector<16x16xf32> to vector<16xf32>
    %73 = vector.shape_cast %72 : vector<16xf32> to vector<16x1xf32>
    %74 = math.log %73 : vector<16x1xf32>
    %75 = arith.addf %74, %61 : vector<16x1xf32>
    %76 = arith.subf %68, %75 : vector<16x1xf32>
    %cst_29 = arith.constant 0.000000e+00 : f32
    %77 = vector.broadcast %cst_29 : f32 to vector<16x1xf32>
    %78 = arith.select %51, %76, %77 : vector<16x1xi1>, vector<16x1xf32>
    %79 = arith.extui %51 : vector<16x1xi1> to vector<16x1xi32>
    %80 = arith.sitofp %79 : vector<16x1xi32> to vector<16x1xf32>
    %cst_30 = arith.constant dense<0.000000e+00> : vector<1xf32>
    %81 = vector.multi_reduction <add>, %80, %cst_30 [0] : vector<16x1xf32> to vector<1xf32>
    %82 = vector.shape_cast %81 : vector<1xf32> to vector<1x1xf32>
    %cst_31 = arith.constant 1.000000e+00 : f32
    %83 = vector.broadcast %cst_31 : f32 to vector<1x1xf32>
    %84 = arith.maximumf %82, %83 : vector<1x1xf32>
    %85 = tpu.reciprocal %84 {approx = true} : vector<1x1xf32> -> vector<1x1xf32>
    %cst_32 = arith.constant dense<0.000000e+00> : vector<1xf32>
    %86 = vector.multi_reduction <add>, %78, %cst_32 [0] : vector<16x1xf32> to vector<1xf32>
    %87 = vector.shape_cast %86 : vector<1xf32> to vector<1x1xf32>
    %88 = arith.mulf %87, %85 : vector<1x1xf32>
    %c0_33 = arith.constant 0 : index
    %c0_34 = arith.constant 0 : index
    %89 = vector.load %arg7[%c0_33, %c0_34] : memref<1x1xf32, #tpu.memory_space<vmem>>, vector<1x1xf32>
    tpu.vector_store %arg7[%c0_33, %c0_34], %88 {strides = array<i32>} : memref<1x1xf32, #tpu.memory_space<vmem>>, vector<1x1xf32>,
    %90 = tpu.iota {dimensions = array<i32: 0>} : vector<8x16xi32>
    %91 = arith.sitofp %90 : vector<8x16xi32> to vector<8x16xf32>
    %cst_35 = arith.constant 0.000000e+00 : f32
    %92 = vector.broadcast %cst_35 : f32 to vector<8x16xf32>
    %93 = arith.cmpf ogt, %26, %92 : vector<8x16xf32>
    %cst_36 = arith.constant -1.000000e+00 : f32
    %94 = vector.broadcast %cst_36 : f32 to vector<8x16xf32>
    %95 = arith.select %93, %91, %94 : vector<8x16xi1>, vector<8x16xf32>
    %cst_37 = arith.constant dense<0xFF800000> : vector<16xf32>
    %96 = vector.multi_reduction <maximumf>, %95, %cst_37 [0] : vector<8x16xf32> to vector<16xf32>
    %97 = vector.shape_cast %96 : vector<16xf32> to vector<1x16xf32>
    %cst_38 = arith.constant 0.000000e+00 : f32
    %98 = vector.broadcast %cst_38 : f32 to vector<8x16xf32>
    %99 = arith.cmpf ogt, %26, %98 : vector<8x16xf32>
    %100 = vector.broadcast %97 : vector<1x16xf32> to vector<8x16xf32>
    %101 = arith.cmpf oeq, %91, %100 : vector<8x16xf32>
    %102 = arith.andi %99, %101 : vector<8x16xi1>
    %cst_39 = arith.constant 1.000000e+00 : f32
    %cst_40 = arith.constant 0.000000e+00 : f32
    %103 = vector.broadcast %cst_39 : f32 to vector<8x16xf32>
    %104 = vector.broadcast %cst_40 : f32 to vector<8x16xf32>
    %105 = arith.select %102, %103, %104 : vector<8x16xi1>, vector<8x16xf32>
    %cst_41 = arith.constant dense<0.000000e+00> : vector<16x128xf32>
    %106 = tpu.matmul %105, %12, %cst_41 {dimension_numbers = #tpu.dot_dimension_numbers<[0], [0], [1], [1], [0, 1, 1, 1], [], []>} : vector<8x16xf32>, vector<8x128xf32>, vector<16x128xf32> -> vector<16x128xf32>
    %cst_42 = arith.constant dense<0.000000e+00> : vector<16x128xf32>
    %107 = tpu.matmul %105, %20, %cst_42 {dimension_numbers = #tpu.dot_dimension_numbers<[0], [0], [1], [1], [0, 1, 1, 1], [], []>} : vector<8x16xf32>, vector<8x128xf32>, vector<16x128xf32> -> vector<16x128xf32>
    %cst_43 = arith.constant 1.000000e+00 : f32
    %108 = vector.broadcast %cst_43 : f32 to vector<8x1xf32>
    %cst_44 = arith.constant dense<0.000000e+00> : vector<16x1xf32>
    %109 = tpu.matmul %105, %108, %cst_44 {dimension_numbers = #tpu.dot_dimension_numbers<[0], [0], [1], [1], [0, 1, 1, 1], [], []>} : vector<8x16xf32>, vector<8x1xf32>, vector<16x1xf32> -> vector<16x1xf32>
    %cst_45 = arith.constant 5.000000e-01 : f32
    %110 = vector.broadcast %cst_45 : f32 to vector<16x1xf32>
    %111 = arith.cmpf ogt, %109, %110 : vector<16x1xf32>
    %112 = vector.extract_strided_slice %30 {offsets = [0, 0], sizes = [16, 128], strides = [1, 1]} : vector<32x128xf32> to vector<16x128xf32>
    %113 = vector.shape_cast %111 : vector<16x1xi1> to vector<16x1xi1>
    %114 = vector.broadcast %113 : vector<16x1xi1> to vector<16x128xi1>
    %115 = arith.select %114, %106, %112 : vector<16x128xi1>, vector<16x128xf32>
    %c0_46 = arith.constant 0 : index
    %c0_47 = arith.constant 0 : index
    %c0_48 = arith.constant 0 : index
    %116 = vector.load %arg8[%c0_46, %c0_47, %c0_48] : memref<1x32x128xf32, #tpu.memory_space<vmem>>, vector<1x16x128xf32>
    %117 = vector.shape_cast %116 : vector<1x16x128xf32> to vector<16x128xf32>
    %118 = vector.shape_cast %115 : vector<16x128xf32> to vector<1x16x128xf32>
    tpu.vector_store %arg8[%c0_46, %c0_47, %c0_48], %118 {strides = array<i32>} : memref<1x32x128xf32, #tpu.memory_space<vmem>>, vector<1x16x128xf32>,
    %119 = vector.extract_strided_slice %30 {offsets = [16, 0], sizes = [16, 128], strides = [1, 1]} : vector<32x128xf32> to vector<16x128xf32>
    %120 = vector.shape_cast %111 : vector<16x1xi1> to vector<16x1xi1>
    %121 = vector.broadcast %120 : vector<16x1xi1> to vector<16x128xi1>
    %122 = arith.select %121, %107, %119 : vector<16x128xi1>, vector<16x128xf32>
    %c0_49 = arith.constant 0 : index
    %c16 = arith.constant 16 : index
    %c0_50 = arith.constant 0 : index
    %123 = vector.load %arg8[%c0_49, %c16, %c0_50] : memref<1x32x128xf32, #tpu.memory_space<vmem>>, vector<1x16x128xf32>
    %124 = vector.shape_cast %123 : vector<1x16x128xf32> to vector<16x128xf32>
    %125 = vector.shape_cast %122 : vector<16x128xf32> to vector<1x16x128xf32>
    tpu.vector_store %arg8[%c0_49, %c16, %c0_50], %125 {strides = array<i32>} : memref<1x32x128xf32, #tpu.memory_space<vmem>>, vector<1x16x128xf32>,
    return
  }
  func.func @transform_0(%arg0: i32, %arg1: memref<1xi32, #tpu.memory_space<smem>>) -> (i32, i32) {
    %c0_i32 = arith.constant 0 : i32
    %c0_i32_0 = arith.constant 0 : i32
    %c0_i32_1 = arith.constant 0 : i32
    return %c0_i32, %c0_i32_0 : i32, i32
  }
  func.func @transform_1(%arg0: i32, %arg1: memref<1xi32, #tpu.memory_space<smem>>) -> (i32, i32) {
    %c0_i32 = arith.constant 0 : i32
    %c0_i32_0 = arith.constant 0 : i32
    %c0_i32_1 = arith.constant 0 : i32
    return %c0_i32, %c0_i32_0 : i32, i32
  }
  func.func @transform_2(%arg0: i32, %arg1: memref<1xi32, #tpu.memory_space<smem>>) -> (i32, i32) {
    %c0_i32 = arith.constant 0 : i32
    %c0_i32_0 = arith.constant 0 : i32
    %c0_i32_1 = arith.constant 0 : i32
    return %c0_i32, %c0_i32_0 : i32, i32
  }
  func.func @transform_3(%arg0: i32, %arg1: memref<1xi32, #tpu.memory_space<smem>>) -> (i32, i32) {
    %c0_i32 = arith.constant 0 : i32
    %c0_i32_0 = arith.constant 0 : i32
    %c0_i32_1 = arith.constant 0 : i32
    return %c0_i32, %c0_i32_0 : i32, i32
  }
  func.func @transform_4(%arg0: i32, %arg1: memref<1xi32, #tpu.memory_space<smem>>) -> (i32, i32, i32) {
    %c0 = arith.constant 0 : index
    %0 = memref.load %arg1[%c0] : memref<1xi32, #tpu.memory_space<smem>>
    %c0_i32 = arith.constant 0 : i32
    %c0_i32_0 = arith.constant 0 : i32
    %c0_i32_1 = arith.constant 0 : i32
    return %0, %c0_i32, %c0_i32_0 : i32, i32, i32
  }
  func.func @transform_5(%arg0: i32, %arg1: memref<1xi32, #tpu.memory_space<smem>>) -> (i32, i32) {
    %c0_i32 = arith.constant 0 : i32
    %c0_i32_0 = arith.constant 0 : i32
    %c0_i32_1 = arith.constant 0 : i32
    return %c0_i32, %c0_i32_0 : i32, i32
  }
  func.func @transform_6(%arg0: i32, %arg1: memref<1xi32, #tpu.memory_space<smem>>) -> (i32, i32, i32) {
    %c0 = arith.constant 0 : index
    %0 = memref.load %arg1[%c0] : memref<1xi32, #tpu.memory_space<smem>>
    %c0_i32 = arith.constant 0 : i32
    %c0_i32_0 = arith.constant 0 : i32
    %c0_i32_1 = arith.constant 0 : i32
    return %0, %c0_i32, %c0_i32_0 : i32, i32, i32
  }
}

</mosaic_0001>

<llo_original>
// kernel: _forward_impl.1
$region0: #{_forward_impl.1}
  #allocation0 [shape = 'u32[]', space=smem, size = 0x4, offset = 0x4, fixed_abs, tag = 'smem constant byte address 0x4 - core index']
  #allocation1 [shape = 'u32[144,128]{1,0:T(1,128)}', space=vmem, size = 0x12000, scoped, tag = 'internal scratch']
  #allocation2 [shape = 's32[1]{0}', space=sflag, size = 0x4, scoped, tag = 'scoped memory for _forward_impl.1']
  #allocation3 [shape = 's32[1]{0:T(128)S(6)}', space=smem, size = 0x200, scoped, tag = 'prefetched SMEM operand 0']
  %s0 = inlined_call_operand.<no memory space> [shape: s32[1], index: 0, kind: input, shape index: {}]
  %s1 = inlined_call_operand.vmem [shape: f32[8,32], index: 1, kind: input, shape index: {}]
  %s2 = inlined_call_operand.vmem [shape: f32[32,256], index: 2, kind: input, shape index: {}]
  %s3 = inlined_call_operand.vmem [shape: s32[8,1], index: 3, kind: input, shape index: {}]
  %s4 = inlined_call_operand.vmem [shape: f32[16,16], index: 4, kind: input, shape index: {}]
  %s5 = inlined_call_operand.vmem [shape: f32[1,32,128], index: 5, kind: input, shape index: {}, may-alias: {5,7}]
  %s6 = inlined_call_operand.hbm [shape: f32[1,1], index: 6, kind: output, shape index: {0}]
  %s7 = inlined_call_operand.vmem [shape: f32[1,32,128], index: 7, kind: output, shape index: {1}, may-alias: {5,7}]
  %8 = xla_tuple %s6, %s7
  %s9 = sld [smem:[#allocation0]]
  $region38: #{_forward_impl.1} parent=0
    _
  %s11 = ssub.s32 1, %s9
  %s12 = scalar_select 0, %s11, %s9
  %13 = sst [smem:[#allocation3]] %s0
  $region1: #{_forward_impl.1} parent=0
    #allocation4 [shape = 'u8[512]{0}', space=vmem, size = 0x400, scoped, tag = 'output window, operand 0, single buffered']
    #allocation5 [shape = 's32[1]{0}', space=sflag, size = 0x4, scoped, tag = 'scoped memory for _forward_impl.1']
    %14 = vsyncpa [#allocation5], 0
    // Predicated region
    $region2: #{_forward_impl.1} parent=1 // pred_check
      _
    $region3: #{_forward_impl.1} parent=1 // pred_check_branch
      %16 = sbr.rel (0) target = $region5
    $region4: #{_forward_impl.1} parent=1 // pred_region
      _
    $region5: #{_forward_impl.1} parent=1 // pred_fallthru
      _
    // Predicated region
    $region6: #{_forward_impl.1} parent=1 // pred_check
      _
    $region7: #{_forward_impl.1} parent=1 // pred_check_branch
      %18 = sbr.rel (0) target = $region9
    $region8: #{_forward_impl.1} parent=1 // pred_region
      _
    $region9: #{_forward_impl.1} parent=1 // pred_fallthru
      _
    // Predicated region
    $region10: #{_forward_impl.1} parent=1 // pred_check
      _
    $region11: #{_forward_impl.1} parent=1 // pred_check_branch
      %20 = sbr.rel (0) target = $region13
    $region12: #{_forward_impl.1} parent=1 // pred_region
      _
    $region13: #{_forward_impl.1} parent=1 // pred_fallthru
      _
    // Predicated region
    $region14: #{_forward_impl.1} parent=1 // pred_check
      _
    $region15: #{_forward_impl.1} parent=1 // pred_check_branch
      %22 = sbr.rel (0) target = $region17
    $region16: #{_forward_impl.1} parent=1 // pred_region
      _
    $region17: #{_forward_impl.1} parent=1 // pred_fallthru
      _
    // Predicated region
    $region18: #{_forward_impl.1} parent=1 // pred_check
      _
    $region19: #{_forward_impl.1} parent=1 // pred_check_branch
      %24 = sbr.rel (0) target = $region21
    $region20: #{_forward_impl.1} parent=1 // pred_region
      %s25 = sld [smem:[#allocation3]]
      %p26 = scmp.lt.s32.totalorder %s25, 0
      %s27 = scalar_select %p26, %s25, 0
      %s28 = smul.addr %s27, 4
      %s29 = smul.addr %s28, 8
      %s30 = scalar_lea.vmem %s5, %s29
      %s31 = sld [smem:[#allocation3]]
    $region21: #{_forward_impl.1} parent=1 // pred_fallthru
      _
    %s32 = sld [smem:[#allocation3]]
    %p33 = scmp.lt.s32.totalorder %s32, 0
    %s34 = scalar_select %p33, %s32, 0
    %s35 = smul.addr %s34, 4
    %s36 = smul.addr %s35, 8
    %s37 = scalar_lea.vmem %s5, %s36
    %s38 = sld [smem:[#allocation3]]
    %p39 = scmp.lt.s32.totalorder %s38, 0
    %s40 = scalar_select %p39, %s38, 0
    %s41 = smul.addr %s40, 4
    %s42 = smul.addr %s41, 8
    %s43 = scalar_lea.vmem %s7, %s42
    %s44 = sld [smem:[#allocation3]]
    %p45 = scmp.lt.s32.totalorder %s44, 0
    %s46 = scalar_select %p45, %s44, 0
    %s47 = smul.addr %s46, 4
    %s48 = smul.addr %s47, 8
    %s49 = scalar_lea.vmem %s5, %s48
    %s50 = sld [smem:[#allocation3]]
    %s51 = sld [smem:[#allocation3]]
    %p52 = scmp.lt.s32.totalorder %s51, 0
    %s53 = scalar_select %p52, %s51, 0
    %s54 = smul.addr %s53, 4
    %s55 = smul.addr %s54, 8
    %s56 = scalar_lea.vmem %s7, %s55
    %s57 = sld [smem:[#allocation3]]
    %v58 = vld [vmem:[%s1] sm:$0xff]
    %v59 = vld [vmem:[%s2] sm:$0xff]
    %v60 = vld [vmem:[%s2 + $0x8] sm:$0xff]
    %v61 = vld [vmem:[%s2 + $0x10] sm:$0xff]
    %v62 = vld [vmem:[%s2 + $0x18] sm:$0xff]
    %v63 = vld [vmem:[%s2 + $0x20] sm:$0xff]
    %v64 = vld [vmem:[%s2 + $0x28] sm:$0xff]
    %v65 = vld [vmem:[%s2 + $0x30] sm:$0xff]
    %v66 = vld [vmem:[%s2 + $0x38] sm:$0xff]
    %vm67 = vcmask 261120
    %v69 = vsel %vm67, %v58, 0
    %71 = vmatprep.subr.mxu0 %v60
    %72 = vmatpush1.msra.mxu0 %v59
    %73 = vmatprep.subr.mxu0 %v62
    %74 = vmatpush1.msra.mxu0 %v61
    %75 = vmatprep.subr.mxu0 %v64
    %76 = vmatpush1.msra.mxu0 %v63
    %77 = vmatprep.subr.mxu0 %v66
    %78 = vmatpush1.msra.mxu0 %v65
    %79 = vmatprep.subr.mxu0 0.0
    %80 = vmatpush1.msra.mxu0 0.0
    %81 = vmatprep.subr.mxu0 0.0
    %82 = vmatpush1.msra.mxu0 0.0
    %83 = vmatprep.subr.mxu0 0.0
    %84 = vmatpush1.msra.mxu0 0.0
    %85 = vmatprep.subr.mxu0 0.0
    %86 = vmatpush1.msra.mxu0 0.0
    %87 = vmatprep.subr.mxu0 0.0
    %88 = vmatpush1.msra.mxu0 0.0
    %89 = vmatprep.subr.mxu0 0.0
    %90 = vmatpush1.msra.mxu0 0.0
    %91 = vmatprep.subr.mxu0 0.0
    %92 = vmatpush1.msra.mxu0 0.0
    %93 = vmatprep.subr.mxu0 0.0
    %94 = vmatpush1.msra.mxu0 0.0
    %95 = vmatprep.subr.mxu0 0.0
    %96 = vmatpush1.msra.mxu0 0.0
    %97 = vmatprep.subr.mxu0 0.0
    %98 = vmatpush1.msra.mxu0 0.0
    %99 = vmatprep.subr.mxu0 0.0
    %100 = vmatpush1.msra.mxu0 0.0
    %101 = vmatprep.subr.mxu0 0.0
    %102 = vmatpush1.msra.mxu0 0.0
    %103 = vmatprep.subr.mxu0 0.0
    %104 = vmatpush1.msra.mxu0 0.0
    %105 = vmatprep.subr.mxu0 0.0
    %106 = vmatpush1.msra.mxu0 0.0
    %107 = vmatprep.subr.mxu0 0.0
    %108 = vmatpush1.msra.mxu0 0.0
    %109 = vmatprep.subr.mxu0 0.0
    %110 = vmatpush1.msra.mxu0 0.0
    %111 = vmatprep.subr.mxu0 0.0
    %112 = vmatpush1.msra.mxu0 0.0
    %113 = vmatprep.subr.mxu0 0.0
    %114 = vmatpush1.msra.mxu0 0.0
    %115 = vmatprep.subr.mxu0 0.0
    %116 = vmatpush1.msra.mxu0 0.0
    %117 = vmatprep.subr.mxu0 0.0
    %118 = vmatpush1.msra.mxu0 0.0
    %119 = vmatprep.subr.mxu0 0.0
    %120 = vmatpush1.msra.mxu0 0.0
    %121 = vmatprep.subr.mxu0 0.0
    %122 = vmatpush1.msra.mxu0 0.0
    %123 = vmatprep.subr.mxu0 0.0
    %124 = vmatpush1.msra.mxu0 0.0
    %125 = vmatprep.subr.mxu0 0.0
    %126 = vmatpush1.msra.mxu0 0.0
    %127 = vmatprep.subr.mxu0 0.0
    %128 = vmatpush1.msra.mxu0 0.0
    %129 = vmatprep.subr.mxu0 0.0
    %130 = vmatpush1.msra.mxu0 0.0
    %131 = vmatprep.subr.mxu0 0.0
    %132 = vmatpush1.msra.mxu0 0.0
    %133 = vmatprep.subr.mxu0 0.0
    %134 = vmatpush1.msra.mxu0 0.0
    %135 = vmatprep.mubr.f32.mxu0 0.0
    %136 = vmatmul.mubr.f32.gmra.mrb[0].mxu0 %v69
    %v137 = vpop.f32.mrb[0].mxu0
    %v138 = vadd.f32 0.0, %v137
    %v139 = vpop.f32.mrb[0].mxu0
    %v140 = vadd.f32 0.0, %v139
    %141 = vdwg.mxu0
    %v142 = vmul.f32 %v138, %v138
    %143 = vadd.xlane.f32.xlu0 %v142
    %v144 = vpop.xlane.xlu0 %143
    %v145 = vadd.f32 %v144, 1e-12
    %v146 = vrsqrt.pop %v145
    %v147 = vmul.f32 %v138, %v146
    %v148 = vmul.f32 %v140, %v140
    %149 = vadd.xlane.f32.xlu0 %v148
    %v150 = vpop.xlane.xlu0 %149
    %v151 = vadd.f32 %v150, 1e-12
    %v152 = vrsqrt.pop %v151
    %v153 = vmul.f32 %v140, %v152
    %v154 = vld [vmem:[%s3] sm:$0xff]
    %v155 = vlaneseq
    %v156 = vand.u32 %v155, 127
    %157 = vset.pattern.permute.xlu0 0
    %158 = vperm.xlu0 %157, %v154
    %v159 = vpop.permute.xlu0 %158
    %vm160 = vcmp.eq.s32.totalorder %v159, %v156
    %v161 = vsel %vm160, 1, 0
    %v162 = vcvt.s32.f32 %v161
    %v163 = vld [vmem:[%s4] sm:$0xff]
    %v164 = vld [vmem:[%s4 + $0x8] sm:$0xff]
    %vm165 = vcmask 130048
    %v167 = vsel %vm165, %v162, 0
    %169 = vmatprep.subr.mxu0 0.0
    %170 = vmatpush1.msra.mxu0 %v163
    %171 = vmatprep.subr.mxu0 0.0
    %172 = vmatpush1.msra.mxu0 %v164
    %173 = vmatprep.subr.mxu0 0.0
    %174 = vmatpush1.msra.mxu0 0.0
    %175 = vmatprep.subr.mxu0 0.0
    %176 = vmatpush1.msra.mxu0 0.0
    %177 = vmatprep.subr.mxu0 0.0
    %178 = vmatpush1.msra.mxu0 0.0
    %179 = vmatprep.subr.mxu0 0.0
    %180 = vmatpush1.msra.mxu0 0.0
    %181 = vmatprep.subr.mxu0 0.0
    %182 = vmatpush1.msra.mxu0 0.0
    %183 = vmatprep.subr.mxu0 0.0
    %184 = vmatpush1.msra.mxu0 0.0
    %185 = vmatprep.subr.mxu0 0.0
    %186 = vmatpush1.msra.mxu0 0.0
    %187 = vmatprep.subr.mxu0 0.0
    %188 = vmatpush1.msra.mxu0 0.0
    %189 = vmatprep.subr.mxu0 0.0
    %190 = vmatpush1.msra.mxu0 0.0
    %191 = vmatprep.subr.mxu0 0.0
    %192 = vmatpush1.msra.mxu0 0.0
    %193 = vmatprep.subr.mxu0 0.0
    %194 = vmatpush1.msra.mxu0 0.0
    %195 = vmatprep.subr.mxu0 0.0
    %196 = vmatpush1.msra.mxu0 0.0
    %197 = vmatprep.subr.mxu0 0.0
    %198 = vmatpush1.msra.mxu0 0.0
    %199 = vmatprep.subr.mxu0 0.0
    %200 = vmatpush1.msra.mxu0 0.0
    %201 = vmatprep.subr.mxu0 0.0
    %202 = vmatpush1.msra.mxu0 0.0
    %203 = vmatprep.subr.mxu0 0.0
    %204 = vmatpush1.msra.mxu0 0.0
    %205 = vmatprep.subr.mxu0 0.0
    %206 = vmatpush1.msra.mxu0 0.0
    %207 = vmatprep.subr.mxu0 0.0
    %208 = vmatpush1.msra.mxu0 0.0
    %209 = vmatprep.subr.mxu0 0.0
    %210 = vmatpush1.msra.mxu0 0.0
    %211 = vmatprep.subr.mxu0 0.0
    %212 = vmatpush1.msra.mxu0 0.0
    %213 = vmatprep.subr.mxu0 0.0
    %214 = vmatpush1.msra.mxu0 0.0
    %215 = vmatprep.subr.mxu0 0.0
    %216 = vmatpush1.msra.mxu0 0.0
    %217 = vmatprep.subr.mxu0 0.0
    %218 = vmatpush1.msra.mxu0 0.0
    %219 = vmatprep.subr.mxu0 0.0
    %220 = vmatpush1.msra.mxu0 0.0
    %221 = vmatprep.subr.mxu0 0.0
    %222 = vmatpush1.msra.mxu0 0.0
    %223 = vmatprep.subr.mxu0 0.0
    %224 = vmatpush1.msra.mxu0 0.0
    %225 = vmatprep.subr.mxu0 0.0
    %226 = vmatpush1.msra.mxu0 0.0
    %227 = vmatprep.subr.mxu0 0.0
    %228 = vmatpush1.msra.mxu0 0.0
    %229 = vmatprep.subr.mxu0 0.0
    %230 = vmatpush1.msra.mxu0 0.0
    %231 = vmatprep.subr.mxu0 0.0
    %232 = vmatpush1.msra.mxu0 0.0
    %233 = vmatprep.mubr.f32.mxu0 0.0
    %234 = vmatmul.mubr.f32.gmra.mrb[0].mxu0 %v167
    %v235 = vpop.f32.mrb[0].mxu0
    %v236 = vadd.f32 0.0, %v235
    %v237 = vpop.f32.mrb[0].mxu0
    %238 = vdwg.mxu0
    %v239 = vld [vmem:[%s49] sm:$0xff]
    %v240 = vld [vmem:[%s49 + $0x8] sm:$0xff]
    %v241 = vld [vmem:[%s49 + $0x10] sm:$0xff]
    %v242 = vld [vmem:[%s49 + $0x18] sm:$0xff]
    %243 = vmatprep.subr.mxu0 0.0
    %244 = vmatpush1.xpose.msra.mxu0 %v239
    %245 = vmatprep.subr.mxu0 0.0
    %246 = vmatpush1.xpose.msra.mxu0 %v240
    %247 = vmatprep.subr.mxu0 0.0
    %248 = vmatpush1.xpose.msra.mxu0 0.0
    %249 = vmatprep.subr.mxu0 0.0
    %250 = vmatpush1.xpose.msra.mxu0 0.0
    %251 = vmatprep.subr.mxu0 0.0
    %252 = vmatpush1.xpose.msra.mxu0 0.0
    %253 = vmatprep.subr.mxu0 0.0
    %254 = vmatpush1.xpose.msra.mxu0 0.0
    %255 = vmatprep.subr.mxu0 0.0
    %256 = vmatpush1.xpose.msra.mxu0 0.0
    %257 = vmatprep.subr.mxu0 0.0
    %258 = vmatpush1.xpose.msra.mxu0 0.0
    %259 = vmatprep.subr.mxu0 0.0
    %260 = vmatpush1.xpose.msra.mxu0 0.0
    %261 = vmatprep.subr.mxu0 0.0
    %262 = vmatpush1.xpose.msra.mxu0 0.0
    %263 = vmatprep.subr.mxu0 0.0
    %264 = vmatpush1.xpose.msra.mxu0 0.0
    %265 = vmatprep.subr.mxu0 0.0
    %266 = vmatpush1.xpose.msra.mxu0 0.0
    %267 = vmatprep.subr.mxu0 0.0
    %268 = vmatpush1.xpose.msra.mxu0 0.0
    %269 = vmatprep.subr.mxu0 0.0
    %270 = vmatpush1.xpose.msra.mxu0 0.0
    %271 = vmatprep.subr.mxu0 0.0
    %272 = vmatpush1.xpose.msra.mxu0 0.0
    %273 = vmatprep.subr.mxu0 0.0
    %274 = vmatpush1.xpose.msra.mxu0 0.0
    %275 = vmatprep.subr.mxu0 0.0
    %276 = vmatpush1.xpose.msra.mxu0 0.0
    %277 = vmatprep.subr.mxu0 0.0
    %278 = vmatpush1.xpose.msra.mxu0 0.0
    %279 = vmatprep.subr.mxu0 0.0
    %280 = vmatpush1.xpose.msra.mxu0 0.0
    %281 = vmatprep.subr.mxu0 0.0
    %282 = vmatpush1.xpose.msra.mxu0 0.0
    %283 = vmatprep.subr.mxu0 0.0
    %284 = vmatpush1.xpose.msra.mxu0 0.0
    %285 = vmatprep.subr.mxu0 0.0
    %286 = vmatpush1.xpose.msra.mxu0 0.0
    %287 = vmatprep.subr.mxu0 0.0
    %288 = vmatpush1.xpose.msra.mxu0 0.0
    %289 = vmatprep.subr.mxu0 0.0
    %290 = vmatpush1.xpose.msra.mxu0 0.0
    %291 = vmatprep.subr.mxu0 0.0
    %292 = vmatpush1.xpose.msra.mxu0 0.0
    %293 = vmatprep.subr.mxu0 0.0
    %294 = vmatpush1.xpose.msra.mxu0 0.0
    %295 = vmatprep.subr.mxu0 0.0
    %296 = vmatpush1.xpose.msra.mxu0 0.0
    %297 = vmatprep.subr.mxu0 0.0
    %298 = vmatpush1.xpose.msra.mxu0 0.0
    %299 = vmatprep.subr.mxu0 0.0
    %300 = vmatpush1.xpose.msra.mxu0 0.0
    %301 = vmatprep.subr.mxu0 0.0
    %302 = vmatpush1.xpose.msra.mxu0 0.0
    %303 = vmatprep.subr.mxu0 0.0
    %304 = vmatpush1.xpose.msra.mxu0 0.0
    %305 = vmatprep.subr.mxu0 0.0
    %306 = vmatpush1.xpose.msra.mxu0 0.0
    %307 = vmatprep.mubr.f32.mxu0 0.0
    %308 = vmatmul.mubr.f32.gmra.mrb[0].mxu0 %v147
    %v309 = vpop.f32.mrb[0].mxu0
    %v310 = vadd.f32 0.0, %v309
    %v311 = vpop.f32.mrb[0].mxu0
    %312 = vdwg.mxu0
    %313 = vmatprep.subr.mxu0 0.0
    %314 = vmatpush1.xpose.msra.mxu0 %v241
    %315 = vmatprep.subr.mxu0 0.0
    %316 = vmatpush1.xpose.msra.mxu0 %v242
    %317 = vmatprep.subr.mxu0 0.0
    %318 = vmatpush1.xpose.msra.mxu0 0.0
    %319 = vmatprep.subr.mxu0 0.0
    %320 = vmatpush1.xpose.msra.mxu0 0.0
    %321 = vmatprep.subr.mxu0 0.0
    %322 = vmatpush1.xpose.msra.mxu0 0.0
    %323 = vmatprep.subr.mxu0 0.0
    %324 = vmatpush1.xpose.msra.mxu0 0.0
    %325 = vmatprep.subr.mxu0 0.0
    %326 = vmatpush1.xpose.msra.mxu0 0.0
    %327 = vmatprep.subr.mxu0 0.0
    %328 = vmatpush1.xpose.msra.mxu0 0.0
    %329 = vmatprep.subr.mxu0 0.0
    %330 = vmatpush1.xpose.msra.mxu0 0.0
    %331 = vmatprep.subr.mxu0 0.0
    %332 = vmatpush1.xpose.msra.mxu0 0.0
    %333 = vmatprep.subr.mxu0 0.0
    %334 = vmatpush1.xpose.msra.mxu0 0.0
    %335 = vmatprep.subr.mxu0 0.0
    %336 = vmatpush1.xpose.msra.mxu0 0.0
    %337 = vmatprep.subr.mxu0 0.0
    %338 = vmatpush1.xpose.msra.mxu0 0.0
    %339 = vmatprep.subr.mxu0 0.0
    %340 = vmatpush1.xpose.msra.mxu0 0.0
    %341 = vmatprep.subr.mxu0 0.0
    %342 = vmatpush1.xpose.msra.mxu0 0.0
    %343 = vmatprep.subr.mxu0 0.0
    %344 = vmatpush1.xpose.msra.mxu0 0.0
    %345 = vmatprep.subr.mxu0 0.0
    %346 = vmatpush1.xpose.msra.mxu0 0.0
    %347 = vmatprep.subr.mxu0 0.0
    %348 = vmatpush1.xpose.msra.mxu0 0.0
    %349 = vmatprep.subr.mxu0 0.0
    %350 = vmatpush1.xpose.msra.mxu0 0.0
    %351 = vmatprep.subr.mxu0 0.0
    %352 = vmatpush1.xpose.msra.mxu0 0.0
    %353 = vmatprep.subr.mxu0 0.0
    %354 = vmatpush1.xpose.msra.mxu0 0.0
    %355 = vmatprep.subr.mxu0 0.0
    %356 = vmatpush1.xpose.msra.mxu0 0.0
    %357 = vmatprep.subr.mxu0 0.0
    %358 = vmatpush1.xpose.msra.mxu0 0.0
    %359 = vmatprep.subr.mxu0 0.0
    %360 = vmatpush1.xpose.msra.mxu0 0.0
    %361 = vmatprep.subr.mxu0 0.0
    %362 = vmatpush1.xpose.msra.mxu0 0.0
    %363 = vmatprep.subr.mxu0 0.0
    %364 = vmatpush1.xpose.msra.mxu0 0.0
    %365 = vmatprep.subr.mxu0 0.0
    %366 = vmatpush1.xpose.msra.mxu0 0.0
    %367 = vmatprep.subr.mxu0 0.0
    %368 = vmatpush1.xpose.msra.mxu0 0.0
    %369 = vmatprep.subr.mxu0 0.0
    %370 = vmatpush1.xpose.msra.mxu0 0.0
    %371 = vmatprep.subr.mxu0 0.0
    %372 = vmatpush1.xpose.msra.mxu0 0.0
    %373 = vmatprep.subr.mxu0 0.0
    %374 = vmatpush1.xpose.msra.mxu0 0.0
    %375 = vmatprep.subr.mxu0 0.0
    %376 = vmatpush1.xpose.msra.mxu0 0.0
    %377 = vmatprep.mubr.f32.mxu0 0.0
    %378 = vmatmul.mubr.f32.gmra.mrb[0].mxu0 %v153
    %v379 = vpop.f32.mrb[0].mxu0
    %v380 = vadd.f32 0.0, %v379
    %v381 = vpop.f32.mrb[0].mxu0
    %382 = vdwg.mxu0
    %v383 = vmul.f32 %v310, 10.0
    %v384 = vmul.f32 %v380, 10.0
    %vm385 = vcmp.gt.f32.partialorder %v236, 0.5
    %v386 = vsel %vm385, 1, 0
    %v387 = vcvt.s32.f32 %v386
    %vm388 = vcmp.le.f32.partialorder %v236, 0.1
    %v389 = vsel %vm388, 1, 0
    %v390 = vcvt.s32.f32 %v389
    %v391 = vmax.f32 %v387, %v390
    %v392 = vsel %vm165, %v387, 0.0
    %393 = vadd.xlane.f32.xlu0 %v392
    %v394 = vpop.xlane.xlu0 %393
    %vm395 = vcmp.gt.f32.partialorder %v394, 0.0
    %vm396 = vcmp.gt.f32.partialorder %v391, 0.0
    %v397 = vsel %vm396, %v383, -1e+30
    %v398 = vsel %vm396, %v384, -1e+30
    %vm399 = vcmp.gt.f32.partialorder %v387, 0.0
    %v400 = vsel %vm399, %v383, -1e+30
    %v401 = vsel %vm399, %v384, -1e+30
    %v402 = vsel %vm165, %v397, -inf
    %403 = vmax.xlane.f32.xlu0 %v402
    %v404 = vpop.xlane.xlu0 %403
    %v405 = vsel %vm165, %v398, -inf
    %406 = vmax.xlane.f32.xlu0 %v405
    %v407 = vpop.xlane.xlu0 %406
    %v408 = vsub.f32 %v397, %v404
    %v409 = vsub.f32 %v398, %v407
    %v410 = vmul.f32 %v408, 1.442695
    %v411 = vpow.pop %v410
    %v412 = vmul.f32 %v409, 1.442695
    %v413 = vpow.pop %v412
    %v414 = vsel %vm165, %v411, 0.0
    %415 = vadd.xlane.f32.xlu0 %v414
    %v416 = vpop.xlane.xlu0 %415
    %v417 = vsel %vm165, %v413, 0.0
    %418 = vadd.xlane.f32.xlu0 %v417
    %v419 = vpop.xlane.xlu0 %418
    %v420 = vlog2.pop %v416
    %v421 = vmul.f32 %v420, 0.6931472
    %v422 = vlog2.pop %v419
    %v423 = vmul.f32 %v422, 0.6931472
    %v424 = vadd.f32 %v421, %v404
    %v425 = vadd.f32 %v423, %v407
    %v426 = vsub.f32 %v400, %v404
    %v427 = vsub.f32 %v401, %v407
    %v428 = vmul.f32 %v426, 1.442695
    %v429 = vpow.pop %v428
    %v430 = vmul.f32 %v427, 1.442695
    %v431 = vpow.pop %v430
    %v432 = vsel %vm165, %v429, 0.0
    %433 = vadd.xlane.f32.xlu0 %v432
    %v434 = vpop.xlane.xlu0 %433
    %v435 = vsel %vm165, %v431, 0.0
    %436 = vadd.xlane.f32.xlu0 %v435
    %v437 = vpop.xlane.xlu0 %436
    %v438 = vlog2.pop %v434
    %v439 = vmul.f32 %v438, 0.6931472
    %v440 = vlog2.pop %v437
    %v441 = vmul.f32 %v440, 0.6931472
    %v442 = vadd.f32 %v439, %v404
    %v443 = vadd.f32 %v441, %v407
    %v444 = vsub.f32 %v424, %v442
    %v445 = vsub.f32 %v425, %v443
    %v446 = vsel %vm395, %v444, 0.0
    %v447 = vsel %vm395, %v445, 0.0
    %v448 = vsel %vm395, 1, 0
    %v449 = vcvt.s32.f32 %v448
    %v450 = vadd.f32 %v449, %v449
    %v451 = vrot.slane %v450, 4
    %v452 = vadd.f32 %v450, %v451
    %v453 = vrot.slane %v452, 2
    %v454 = vadd.f32 %v452, %v453
    %v455 = vrot.slane %v454, 1
    %v456 = vadd.f32 %v454, %v455
    %v457 = vmax.f32 %v456, 1.0
    %v458 = vrcp.pop %v457
    %v459 = vadd.f32 %v446, %v447
    %v460 = vrot.slane %v459, 4
    %v461 = vadd.f32 %v459, %v460
    %v462 = vrot.slane %v461, 2
    %v463 = vadd.f32 %v461, %v462
    %v464 = vrot.slane %v463, 1
    %v465 = vadd.f32 %v463, %v464
    %v466 = vmul.f32 %v465, %v458
    %vm467 = vcmask 0
    %468 = vst.msk [vmem:[#allocation4] sm:$0x1] %vm467, %v466
    %v469 = vlaneseq
    %v470 = vshrl.u32 %v469, 7
    %v471 = vcvt.s32.f32 %v470
    %vm472 = vcmp.gt.f32.partialorder %v162, 0.0
    %v473 = vsel %vm472, %v471, -1.0
    %v474 = vsel %vm165, %v473, -inf
    %v475 = vrot.slane %v474, 4
    %v476 = vmax.f32 %v474, %v475
    %v477 = vrot.slane %v476, 2
    %v478 = vmax.f32 %v476, %v477
    %v479 = vrot.slane %v478, 1
    %v480 = vmax.f32 %v478, %v479
    %vm481 = vcmp.eq.f32.partialorder %v471, %v480
    %vm482 = vmand %vm472, %vm481
    %v483 = vsel %vm482, 1.0, 0.0
    %484 = vxpose.xlu0.b32.start [1/16] %v483, 128
    %485 = vxpose.xlu0.b32.cont [2/16] 0.0, 128
    %486 = vxpose.xlu0.b32.cont [3/16] 0.0, 128
    %487 = vxpose.xlu0.b32.cont [4/16] 0.0, 128
    %488 = vxpose.xlu0.b32.cont [5/16] 0.0, 128
    %489 = vxpose.xlu0.b32.cont [6/16] 0.0, 128
    %490 = vxpose.xlu0.b32.cont [7/16] 0.0, 128
    %491 = vxpose.xlu0.b32.cont [8/16] 0.0, 128
    %492 = vxpose.xlu0.b32.cont [9/16] 0.0, 128
    %493 = vxpose.xlu0.b32.cont [10/16] 0.0, 128
    %494 = vxpose.xlu0.b32.cont [11/16] 0.0, 128
    %495 = vxpose.xlu0.b32.cont [12/16] 0.0, 128
    %496 = vxpose.xlu0.b32.cont [13/16] 0.0, 128
    %497 = vxpose.xlu0.b32.cont [14/16] 0.0, 128
    %498 = vxpose.xlu0.b32.cont [15/16] 0.0, 128
    %499 = vxpose.xlu0.b32.end [16/16] 0.0, 128
    %v500 = vpop.trf.xlu0
    %v501 = vpop.trf.xlu0
    %v502 = vpop.trf.xlu0
    %v503 = vpop.trf.xlu0
    %v504 = vpop.trf.xlu0
    %v505 = vpop.trf.xlu0
    %v506 = vpop.trf.xlu0
    %v507 = vpop.trf.xlu0
    %v508 = vpop.trf.xlu0
    %v509 = vpop.trf.xlu0
    %v510 = vpop.trf.xlu0
    %v511 = vpop.trf.xlu0
    %v512 = vpop.trf.xlu0
    %v513 = vpop.trf.xlu0
    %v514 = vpop.trf.xlu0
    %v515 = vpop.trf.xlu0
    %vm516 = vcmask 64512
    %v518 = vsel %vm516, %v500, 0
    %v521 = vsel %vm516, %v501, 0
    %523 = vmatprep.subr.mxu0 0.0
    %524 = vmatpush1.msra.mxu0 %v147
    %525 = vmatprep.subr.mxu0 0.0
    %526 = vmatpush1.msra.mxu0 0.0
    %527 = vmatprep.subr.mxu0 0.0
    %528 = vmatpush1.msra.mxu0 0.0
    %529 = vmatprep.subr.mxu0 0.0
    %530 = vmatpush1.msra.mxu0 0.0
    %531 = vmatprep.subr.mxu0 0.0
    %532 = vmatpush1.msra.mxu0 0.0
    %533 = vmatprep.subr.mxu0 0.0
    %534 = vmatpush1.msra.mxu0 0.0
    %535 = vmatprep.subr.mxu0 0.0
    %536 = vmatpush1.msra.mxu0 0.0
    %537 = vmatprep.subr.mxu0 0.0
    %538 = vmatpush1.msra.mxu0 0.0
    %539 = vmatprep.subr.mxu0 0.0
    %540 = vmatpush1.msra.mxu0 0.0
    %541 = vmatprep.subr.mxu0 0.0
    %542 = vmatpush1.msra.mxu0 0.0
    %543 = vmatprep.subr.mxu0 0.0
    %544 = vmatpush1.msra.mxu0 0.0
    %545 = vmatprep.subr.mxu0 0.0
    %546 = vmatpush1.msra.mxu0 0.0
    %547 = vmatprep.subr.mxu0 0.0
    %548 = vmatpush1.msra.mxu0 0.0
    %549 = vmatprep.subr.mxu0 0.0
    %550 = vmatpush1.msra.mxu0 0.0
    %551 = vmatprep.subr.mxu0 0.0
    %552 = vmatpush1.msra.mxu0 0.0
    %553 = vmatprep.subr.mxu0 0.0
    %554 = vmatpush1.msra.mxu0 0.0
    %555 = vmatprep.subr.mxu0 0.0
    %556 = vmatpush1.msra.mxu0 0.0
    %557 = vmatprep.subr.mxu0 0.0
    %558 = vmatpush1.msra.mxu0 0.0
    %559 = vmatprep.subr.mxu0 0.0
    %560 = vmatpush1.msra.mxu0 0.0
    %561 = vmatprep.subr.mxu0 0.0
    %562 = vmatpush1.msra.mxu0 0.0
    %563 = vmatprep.subr.mxu0 0.0
    %564 = vmatpush1.msra.mxu0 0.0
    %565 = vmatprep.subr.mxu0 0.0
    %566 = vmatpush1.msra.mxu0 0.0
    %567 = vmatprep.subr.mxu0 0.0
    %568 = vmatpush1.msra.mxu0 0.0
    %569 = vmatprep.subr.mxu0 0.0
    %570 = vmatpush1.msra.mxu0 0.0
    %571 = vmatprep.subr.mxu0 0.0
    %572 = vmatpush1.msra.mxu0 0.0
    %573 = vmatprep.subr.mxu0 0.0
    %574 = vmatpush1.msra.mxu0 0.0
    %575 = vmatprep.subr.mxu0 0.0
    %576 = vmatpush1.msra.mxu0 0.0
    %577 = vmatprep.subr.mxu0 0.0
    %578 = vmatpush1.msra.mxu0 0.0
    %579 = vmatprep.subr.mxu0 0.0
    %580 = vmatpush1.msra.mxu0 0.0
    %581 = vmatprep.subr.mxu0 0.0
    %582 = vmatpush1.msra.mxu0 0.0
    %583 = vmatprep.subr.mxu0 0.0
    %584 = vmatpush1.msra.mxu0 0.0
    %585 = vmatprep.subr.mxu0 0.0
    %586 = vmatpush1.msra.mxu0 0.0
    %587 = vmatprep.mubr.f32.mxu0 0.0
    %588 = vmatmul.mubr.f32.gmra.mrb[0].mxu0 %v518
    %v589 = vpop.f32.mrb[0].mxu0
    %v590 = vadd.f32 0.0, %v589
    %v591 = vpop.f32.mrb[0].mxu0
    %592 = vmatprep.mubr.f32.mxu0 0.0
    %593 = vmatmul.mubr.f32.gmra.mrb[0].mxu0 %v521
    %v594 = vpop.f32.mrb[0].mxu0
    %v595 = vadd.f32 0.0, %v594
    %v596 = vpop.f32.mrb[0].mxu0
    %597 = vdwg.mxu0
    %598 = vmatprep.subr.mxu0 0.0
    %599 = vmatpush1.msra.mxu0 %v153
    %600 = vmatprep.subr.mxu0 0.0
    %601 = vmatpush1.msra.mxu0 0.0
    %602 = vmatprep.subr.mxu0 0.0
    %603 = vmatpush1.msra.mxu0 0.0
    %604 = vmatprep.subr.mxu0 0.0
    %605 = vmatpush1.msra.mxu0 0.0
    %606 = vmatprep.subr.mxu0 0.0
    %607 = vmatpush1.msra.mxu0 0.0
    %608 = vmatprep.subr.mxu0 0.0
    %609 = vmatpush1.msra.mxu0 0.0
    %610 = vmatprep.subr.mxu0 0.0
    %611 = vmatpush1.msra.mxu0 0.0
    %612 = vmatprep.subr.mxu0 0.0
    %613 = vmatpush1.msra.mxu0 0.0
    %614 = vmatprep.subr.mxu0 0.0
    %615 = vmatpush1.msra.mxu0 0.0
    %616 = vmatprep.subr.mxu0 0.0
    %617 = vmatpush1.msra.mxu0 0.0
    %618 = vmatprep.subr.mxu0 0.0
    %619 = vmatpush1.msra.mxu0 0.0
    %620 = vmatprep.subr.mxu0 0.0
    %621 = vmatpush1.msra.mxu0 0.0
    %622 = vmatprep.subr.mxu0 0.0
    %623 = vmatpush1.msra.mxu0 0.0
    %624 = vmatprep.subr.mxu0 0.0
    %625 = vmatpush1.msra.mxu0 0.0
    %626 = vmatprep.subr.mxu0 0.0
    %627 = vmatpush1.msra.mxu0 0.0
    %628 = vmatprep.subr.mxu0 0.0
    %629 = vmatpush1.msra.mxu0 0.0
    %630 = vmatprep.subr.mxu0 0.0
    %631 = vmatpush1.msra.mxu0 0.0
    %632 = vmatprep.subr.mxu0 0.0
    %633 = vmatpush1.msra.mxu0 0.0
    %634 = vmatprep.subr.mxu0 0.0
    %635 = vmatpush1.msra.mxu0 0.0
    %636 = vmatprep.subr.mxu0 0.0
    %637 = vmatpush1.msra.mxu0 0.0
    %638 = vmatprep.subr.mxu0 0.0
    %639 = vmatpush1.msra.mxu0 0.0
    %640 = vmatprep.subr.mxu0 0.0
    %641 = vmatpush1.msra.mxu0 0.0
    %642 = vmatprep.subr.mxu0 0.0
    %643 = vmatpush1.msra.mxu0 0.0
    %644 = vmatprep.subr.mxu0 0.0
    %645 = vmatpush1.msra.mxu0 0.0
    %646 = vmatprep.subr.mxu0 0.0
    %647 = vmatpush1.msra.mxu0 0.0
    %648 = vmatprep.subr.mxu0 0.0
    %649 = vmatpush1.msra.mxu0 0.0
    %650 = vmatprep.subr.mxu0 0.0
    %651 = vmatpush1.msra.mxu0 0.0
    %652 = vmatprep.subr.mxu0 0.0
    %653 = vmatpush1.msra.mxu0 0.0
    %654 = vmatprep.subr.mxu0 0.0
    %655 = vmatpush1.msra.mxu0 0.0
    %656 = vmatprep.subr.mxu0 0.0
    %657 = vmatpush1.msra.mxu0 0.0
    %658 = vmatprep.subr.mxu0 0.0
    %659 = vmatpush1.msra.mxu0 0.0
    %660 = vmatprep.subr.mxu0 0.0
    %661 = vmatpush1.msra.mxu0 0.0
    %662 = vmatprep.mubr.f32.mxu0 0.0
    %663 = vmatmul.mubr.f32.gmra.mrb[0].mxu0 %v518
    %v664 = vpop.f32.mrb[0].mxu0
    %v665 = vadd.f32 0.0, %v664
    %v666 = vpop.f32.mrb[0].mxu0
    %667 = vmatprep.mubr.f32.mxu0 0.0
    %668 = vmatmul.mubr.f32.gmra.mrb[0].mxu0 %v521
    %v669 = vpop.f32.mrb[0].mxu0
    %v670 = vadd.f32 0.0, %v669
    %v671 = vpop.f32.mrb[0].mxu0
    %672 = vdwg.mxu0
    %673 = vmatprep.subr.mxu0 0.0
    %674 = vmatpush1.msra.mxu0 1.0
    %675 = vmatprep.subr.mxu0 0.0
    %676 = vmatpush1.msra.mxu0 0.0
    %677 = vmatprep.subr.mxu0 0.0
    %678 = vmatpush1.msra.mxu0 0.0
    %679 = vmatprep.subr.mxu0 0.0
    %680 = vmatpush1.msra.mxu0 0.0
    %681 = vmatprep.subr.mxu0 0.0
    %682 = vmatpush1.msra.mxu0 0.0
    %683 = vmatprep.subr.mxu0 0.0
    %684 = vmatpush1.msra.mxu0 0.0
    %685 = vmatprep.subr.mxu0 0.0
    %686 = vmatpush1.msra.mxu0 0.0
    %687 = vmatprep.subr.mxu0 0.0
    %688 = vmatpush1.msra.mxu0 0.0
    %689 = vmatprep.subr.mxu0 0.0
    %690 = vmatpush1.msra.mxu0 0.0
    %691 = vmatprep.subr.mxu0 0.0
    %692 = vmatpush1.msra.mxu0 0.0
    %693 = vmatprep.subr.mxu0 0.0
    %694 = vmatpush1.msra.mxu0 0.0
    %695 = vmatprep.subr.mxu0 0.0
    %696 = vmatpush1.msra.mxu0 0.0
    %697 = vmatprep.subr.mxu0 0.0
    %698 = vmatpush1.msra.mxu0 0.0
    %699 = vmatprep.subr.mxu0 0.0
    %700 = vmatpush1.msra.mxu0 0.0
    %701 = vmatprep.subr.mxu0 0.0
    %702 = vmatpush1.msra.mxu0 0.0
    %703 = vmatprep.subr.mxu0 0.0
    %704 = vmatpush1.msra.mxu0 0.0
    %705 = vmatprep.subr.mxu0 0.0
    %706 = vmatpush1.msra.mxu0 0.0
    %707 = vmatprep.subr.mxu0 0.0
    %708 = vmatpush1.msra.mxu0 0.0
    %709 = vmatprep.subr.mxu0 0.0
    %710 = vmatpush1.msra.mxu0 0.0
    %711 = vmatprep.subr.mxu0 0.0
    %712 = vmatpush1.msra.mxu0 0.0
    %713 = vmatprep.subr.mxu0 0.0
    %714 = vmatpush1.msra.mxu0 0.0
    %715 = vmatprep.subr.mxu0 0.0
    %716 = vmatpush1.msra.mxu0 0.0
    %717 = vmatprep.subr.mxu0 0.0
    %718 = vmatpush1.msra.mxu0 0.0
    %719 = vmatprep.subr.mxu0 0.0
    %720 = vmatpush1.msra.mxu0 0.0
    %721 = vmatprep.subr.mxu0 0.0
    %722 = vmatpush1.msra.mxu0 0.0
    %723 = vmatprep.subr.mxu0 0.0
    %724 = vmatpush1.msra.mxu0 0.0
    %725 = vmatprep.subr.mxu0 0.0
    %726 = vmatpush1.msra.mxu0 0.0
    %727 = vmatprep.subr.mxu0 0.0
    %728 = vmatpush1.msra.mxu0 0.0
    %729 = vmatprep.subr.mxu0 0.0
    %730 = vmatpush1.msra.mxu0 0.0
    %731 = vmatprep.subr.mxu0 0.0
    %732 = vmatpush1.msra.mxu0 0.0
    %733 = vmatprep.subr.mxu0 0.0
    %734 = vmatpush1.msra.mxu0 0.0
    %735 = vmatprep.subr.mxu0 0.0
    %736 = vmatpush1.msra.mxu0 0.0
    %737 = vmatprep.mubr.f32.mxu0 0.0
    %738 = vmatmul.mubr.f32.gmra.mrb[0].mxu0 %v518
    %v739 = vpop.f32.mrb[0].mxu0
    %v740 = vadd.f32 0.0, %v739
    %v741 = vpop.f32.mrb[0].mxu0
    %742 = vmatprep.mubr.f32.mxu0 0.0
    %743 = vmatmul.mubr.f32.gmra.mrb[0].mxu0 %v521
    %v744 = vpop.f32.mrb[0].mxu0
    %v745 = vadd.f32 0.0, %v744
    %v746 = vpop.f32.mrb[0].mxu0
    %747 = vdwg.mxu0
    %vm748 = vcmp.gt.f32.partialorder %v740, 0.5
    %vm749 = vcmp.gt.f32.partialorder %v745, 0.5
    %v750 = vsel %vm748, 1, 0
    %v751 = vsel %vm749, 1, 0
    %752 = vset.pattern.permute.xlu0 0
    %753 = vperm.xlu0 %752, %v750
    %v754 = vpop.permute.xlu0 %753
    %755 = vset.pattern.permute.xlu0 0
    %756 = vperm.xlu0 %755, %v751
    %v757 = vpop.permute.xlu0 %756
    %vm758 = vcmp.eq.s32.totalorder %v754, 1
    %vm759 = vcmp.eq.s32.totalorder %v757, 1
    %v760 = vsel %vm758, %v590, %v239
    %v761 = vsel %vm759, %v595, %v240
    %762 = vst [vmem:[%s56] sm:$0xff] %v760
    %763 = vst [vmem:[%s56 + $0x8] sm:$0xff] %v761
    %v764 = vsel %vm758, %v665, %v241
    %v765 = vsel %vm759, %v670, %v242
    %766 = vst [vmem:[%s56 + $0x10] sm:$0xff] %v764
    %767 = vst [vmem:[%s56 + $0x18] sm:$0xff] %v765
    %s768 = sld [smem:[#allocation3]]
    %p769 = scmp.lt.s32.totalorder %s768, 0
    %s770 = scalar_select %p769, %s768, 0
    %s771 = smul.addr %s770, 4
    %s772 = smul.addr %s771, 8
    %s773 = scalar_lea.vmem %s7, %s772
    // Predicated region
    $region22: #{_forward_impl.1} parent=1 // pred_check
      _
    $region23: #{_forward_impl.1} parent=1 // pred_check_branch
      %775 = sbr.rel (0) target = $region25
    $region24: #{_forward_impl.1} parent=1 // pred_region
      %s777 = ssub.s32 16, 16
      %778 = vsyncadd [#allocation5], %s777
      %s780 = sshll.u32 [#allocation4], 4
      %s781 = int_to_ptr.vmem [resolvable:$true] %s780
      %783 = dma.vmem_to_hbm [thread:$0]  %s781, 16, %s6, [#allocation5]
    $region25: #{_forward_impl.1} parent=1 // pred_fallthru
      _
    // Predicated region
    $region26: #{_forward_impl.1} parent=1 // pred_check
      _
    $region27: #{_forward_impl.1} parent=1 // pred_check_branch
      %785 = sbr.rel (0) target = $region29
    $region28: #{_forward_impl.1} parent=1 // pred_region
      %s786 = sld [smem:[#allocation3]]
    $region29: #{_forward_impl.1} parent=1 // pred_fallthru
      _
    // Predicated region
    $region30: #{_forward_impl.1} parent=1 // pred_check
      _
    $region31: #{_forward_impl.1} parent=1 // pred_check_branch
      %788 = sbr.rel (0) target = $region33
    $region32: #{_forward_impl.1} parent=1 // pred_region
      %789 = dma.done [#allocation5], 16
    $region33: #{_forward_impl.1} parent=1 // pred_fallthru
      _
    // Predicated region
    $region34: #{_forward_impl.1} parent=1 // pred_check
      _
    $region35: #{_forward_impl.1} parent=1 // pred_check_branch
      %791 = sbr.rel (0) target = $region37
    $region36: #{_forward_impl.1} parent=1 // pred_region
      %s792 = sld [smem:[#allocation3]]
      %p793 = scmp.lt.s32.totalorder %s792, 0
      %s794 = scalar_select %p793, %s792, 0
      %s795 = smul.addr %s794, 4
      %s796 = smul.addr %s795, 8
      %s797 = scalar_lea.vmem %s7, %s796
    $region37: #{_forward_impl.1} parent=1 // pred_fallthru
      _
    %798 = vsyncpa [#allocation5], 1

</llo_original>
